<compile_context>
chip_gen: v5e
topology: v5e:2x2
jax: 0.10.0
libtpu: 0.0.40
codegen_flags: <defaults>
</compile_context>

<pallas_src>
from functools import partial

import jax
import jax.numpy as jnp
from jax.experimental import pallas as pl
from jax.experimental.pallas import tpu as pltpu


def _decoder_linear_kernel(x_ref, w_ref, b_ref, o_ref):
    # (n_cls, K) x (TM, K)^T -> (n_cls, TM); f32 accumulation on the MXU.
    acc = jax.lax.dot_general(
        w_ref[...], x_ref[...],
        dimension_numbers=(((1,), (1,)), ((), ())),   # contract K with K (trans_b)
        preferred_element_type=jnp.float32)
    o_ref[...] = (acc + b_ref[...]).astype(o_ref.dtype)


def _pick_tm(B, HW, K, N, x_sz, w_sz, o_sz, budget_bytes=26 << 20):
    """Token-tile size: rows of the x block / lane dim of the output block."""
    if HW <= 128:
        return HW                              # full-dim blocks are always legal
    # VMEM available for the double-buffered x / output tiles after the weight.
    avail = max(budget_bytes - 2 * N * K * w_sz, 4 << 20)
    per_row = 2 * (K * x_sz + N * o_sz)
    max_rows = max(avail // max(per_row, 1), 128)
    if B >= 2 and HW <= max_rows and HW <= 2048:
        return HW                              # one whole image per step, no ragged edge
    tm = int(min(max_rows, 2048, HW))
    tm = max(128, (tm // 128) * 128)           # lane-dense output stores
    # Keep >= 2 grid steps so both v7x TensorCores get work ("parallel" grid).
    if B * ((HW + tm - 1) // tm) < 2:
        half = (HW + 1) // 2
        tm = max(128, ((half + 127) // 128) * 128)
    return tm


def prepare_decoder_linear_params(weight, bias):
    """Done once at model init (not per forward): bias as an f32 column so the
    kernel broadcasts it over the token (lane) dim with no per-call casts."""
    return weight, bias.astype(jnp.float32).reshape(-1, 1)


@partial(jax.jit, static_argnums=(3, 4))
def decoder_linear_forward(x, weight, bias_col, im_size, patch_size):
    """x: (B, HW, d_encoder); weight: (n_cls, d_encoder) [PyTorch layout];
    bias_col: (n_cls, 1) f32.  Returns (B, n_cls, GS, HW // GS)."""
    H, W = im_size
    GS = H // patch_size
    B, HW, K = x.shape
    N = weight.shape[0]

    out_dtype = x.dtype
    x_sz = jnp.dtype(x.dtype).itemsize
    w_sz = jnp.dtype(weight.dtype).itemsize
    o_sz = jnp.dtype(out_dtype).itemsize

    TM = _pick_tm(B, HW, K, N, x_sz, w_sz, o_sz)
    num_m = pl.cdiv(HW, TM)

    # Actual footprint (+ ~25% headroom), not a blanket over-request.
    footprint = (2 * TM * K * x_sz        # x tile, double-buffered
                 + 2 * N * TM * o_sz      # output tile, double-buffered
                 + 2 * N * K * w_sz       # resident weight (worst case 2 bufs)
                 + 2 * N * 4)             # bias column
    vmem_limit = int(min(max(footprint + footprint // 4 + (1 << 20), 8 << 20),
                         40 << 20))

    out = pl.pallas_call(
        _decoder_linear_kernel,
        out_shape=jax.ShapeDtypeStruct((B, N, HW), out_dtype),
        grid_spec=pltpu.PrefetchScalarGridSpec(
            num_scalar_prefetch=0,
            grid=(B, num_m),
            in_specs=[
                # x token tile (pipelined / double-buffered by Pallas).
                # TODO(synk): sweep pipeline_mode=pl.Buffered(3) here on v7x if a
                # profile shows exposed DMA at tile boundaries.
                pl.BlockSpec((None, TM, K), lambda b, m: (b, m, 0)),
                # Weight / bias: constant index_map -> resident, no re-DMA.
                # TODO(synk): pipeline_mode=pl.Buffered(1) would drop their second
                # buffer (~K*N bytes of VMEM); sweep once confirmed supported.
                pl.BlockSpec((N, K), lambda b, m: (0, 0)),
                pl.BlockSpec((N, 1), lambda b, m: (0, 0)),
            ],
            # Transposed layout (B, n_cls, HW): the token tile is the lane dim.
            out_specs=pl.BlockSpec((None, N, TM), lambda b, m: (b, 0, m)),
        ),
        compiler_params=pltpu.CompilerParams(
            dimension_semantics=("parallel", "parallel"),
            vmem_limit_bytes=vmem_limit,
        ),
    )(x, weight, bias_col)

    # (B, n_cls, HW) -> (B, n_cls, GS, HW//GS): pure metadata reshape, no copy.
    return out.reshape(B, N, GS, HW // GS)


def _reference(x, weight, bias, im_size, patch_size):
    H, W = im_size
    GS = H // patch_size
    B, HW, _ = x.shape
    n_cls = weight.shape[0]
    lin = jnp.einsum("bmd,nd->bmn", x, weight,
                     precision=jax.lax.Precision.HIGHEST) + bias
    return lin.reshape(B, GS, HW // GS, n_cls).transpose(0, 3, 1, 2)


if __name__ == "__main__":
    key = jax.random.PRNGKey(0)

    # --- test 1: tiny shapes (full-HW tile path) ---------------------------
    B, d_encoder, n_cls, patch_size = 2, 32, 8, 4
    H = W = 16
    GS = H // patch_size
    HW = (H // patch_size) * (W // patch_size)            # 16 tokens

    k1, k2, k3, key = jax.random.split(key, 4)
    x = jax.random.normal(k1, (B, HW, d_encoder), dtype=jnp.float32)
    weight = 0.02 * jax.random.truncated_normal(
        k2, -2.0, 2.0, (n_cls, d_encoder), dtype=jnp.float32)
    bias = 0.02 * jax.random.normal(k3, (n_cls,), dtype=jnp.float32)

    w_p, b_p = prepare_decoder_linear_params(weight, bias)
    out = jax.block_until_ready(
        decoder_linear_forward(x, w_p, b_p, (H, W), patch_size))
    ref = _reference(x, weight, bias, (H, W), patch_size)
    assert out.shape == (B, n_cls, GS, HW // GS)
    assert jnp.allclose(out, ref, atol=2e-5, rtol=2e-5)

    # --- test 2: 128-row tiles + ragged last tile (boundary masking) -------
    B, d_encoder, n_cls, patch_size = 1, 48, 21, 16
    H = W = 224
    GS = H // patch_size                                   # 14
    HW = GS * (W // patch_size)                            # 196 -> tiles 128 + 68

    k1, k2, k3, key = jax.random.split(key, 4)
    x = jax.random.normal(k1, (B, HW, d_encoder), dtype=jnp.float32)
    weight = 0.02 * jax.random.truncated_normal(
        k2, -2.0, 2.0, (n_cls, d_encoder), dtype=jnp.float32)
    bias = 0.02 * jax.random.normal(k3, (n_cls,), dtype=jnp.float32)

    w_p, b_p = prepare_decoder_linear_params(weight, bias)
    out = jax.block_until_ready(
        decoder_linear_forward(x, w_p, b_p, (H, W), patch_size))
    ref = _reference(x, weight, bias, (H, W), patch_size)
    assert out.shape == (B, n_cls, GS, HW // GS)
    assert jnp.allclose(out, ref, atol=2e-5, rtol=2e-5)

    print("KERNEL_OK")
</pallas_src>

<mosaic_0001>
module attributes {stable_mosaic.version = 11 : i64} {
  func.func @_decoder_linear_kernel(%arg0: i32, %arg1: i32, %arg2: memref<1x16x32xf32, #tpu.memory_space<vmem>>, %arg3: memref<8x32xf32, #tpu.memory_space<vmem>>, %arg4: memref<8x1xf32, #tpu.memory_space<vmem>>, %arg5: memref<1x8x16xf32, #tpu.memory_space<vmem>>) attributes {dimension_semantics = [#tpu.dimension_semantics<parallel>, #tpu.dimension_semantics<parallel>], iteration_bounds = array<i64: 2, 1>, scalar_prefetch = 0 : i64, scratch_operands = 0 : i64, tpu.core_type = #tpu.core_type<tc>, window_params = [{transform_indices = @transform_0, window_bounds = array<i64: 1, 16, 32>}, {pipeline_mode = #tpu.pipeline_mode<synchronous>, transform_indices = @transform_1, window_bounds = array<i64: 8, 32>}, {pipeline_mode = #tpu.pipeline_mode<synchronous>, transform_indices = @transform_2, window_bounds = array<i64: 8, 1>}, {transform_indices = @transform_3, window_bounds = array<i64: 1, 8, 16>}]} {
    %c0 = arith.constant 0 : index
    %c0_0 = arith.constant 0 : index
    %0 = vector.load %arg3[%c0, %c0_0] : memref<8x32xf32, #tpu.memory_space<vmem>>, vector<8x32xf32>
    %c0_1 = arith.constant 0 : index
    %c0_2 = arith.constant 0 : index
    %c0_3 = arith.constant 0 : index
    %1 = vector.load %arg2[%c0_1, %c0_2, %c0_3] : memref<1x16x32xf32, #tpu.memory_space<vmem>>, vector<1x16x32xf32>
    %2 = vector.shape_cast %1 : vector<1x16x32xf32> to vector<16x32xf32>
    %cst = arith.constant dense<0.000000e+00> : vector<8x16xf32>
    %3 = tpu.matmul %0, %2, %cst {dimension_numbers = #tpu.dot_dimension_numbers<[1], [1], [0], [0], [0, 0, 1, 0], [], []>} : vector<8x32xf32>, vector<16x32xf32>, vector<8x16xf32> -> vector<8x16xf32>
    %c0_4 = arith.constant 0 : index
    %c0_5 = arith.constant 0 : index
    %4 = vector.load %arg4[%c0_4, %c0_5] : memref<8x1xf32, #tpu.memory_space<vmem>>, vector<8x1xf32>
    %5 = vector.broadcast %4 : vector<8x1xf32> to vector<8x16xf32>
    %6 = arith.addf %3, %5 : vector<8x16xf32>
    %c0_6 = arith.constant 0 : index
    %c0_7 = arith.constant 0 : index
    %c0_8 = arith.constant 0 : index
    %7 = vector.load %arg5[%c0_6, %c0_7, %c0_8] : memref<1x8x16xf32, #tpu.memory_space<vmem>>, vector<1x8x16xf32>
    %8 = vector.shape_cast %7 : vector<1x8x16xf32> to vector<8x16xf32>
    %9 = vector.shape_cast %6 : vector<8x16xf32> to vector<1x8x16xf32>
    tpu.vector_store %arg5[%c0_6, %c0_7, %c0_8], %9 {strides = array<i32>} : memref<1x8x16xf32, #tpu.memory_space<vmem>>, vector<1x8x16xf32>,
    return
  }
  func.func @transform_0(%arg0: i32, %arg1: i32) -> (i32, i32, i32) {
    %c0_i32 = arith.constant 0 : i32
    %c0_i32_0 = arith.constant 0 : i32
    return %arg0, %arg1, %c0_i32 : i32, i32, i32
  }
  func.func @transform_1(%arg0: i32, %arg1: i32) -> (i32, i32) {
    %c0_i32 = arith.constant 0 : i32
    %c0_i32_0 = arith.constant 0 : i32
    %c0_i32_1 = arith.constant 0 : i32
    return %c0_i32, %c0_i32_0 : i32, i32
  }
  func.func @transform_2(%arg0: i32, %arg1: i32) -> (i32, i32) {
    %c0_i32 = arith.constant 0 : i32
    %c0_i32_0 = arith.constant 0 : i32
    %c0_i32_1 = arith.constant 0 : i32
    return %c0_i32, %c0_i32_0 : i32, i32
  }
  func.func @transform_3(%arg0: i32, %arg1: i32) -> (i32, i32, i32) {
    %c0_i32 = arith.constant 0 : i32
    %c0_i32_0 = arith.constant 0 : i32
    return %arg0, %c0_i32, %arg1 : i32, i32, i32
  }
}

</mosaic_0001>

<llo_original>
// kernel: decoder_linear_forward.1
$region0: #{decoder_linear_forward.1}
  #allocation0 [shape = 'u32[]', space=smem, size = 0x4, offset = 0x4, fixed_abs, tag = 'smem constant byte address 0x4 - core index']
  #allocation1 [shape = 'u32[72,128]{1,0:T(1,128)}', space=vmem, size = 0x9000, scoped, tag = 'internal scratch']
  %s0 = inlined_call_operand.hbm [shape: f32[2,16,32], index: 0, kind: input, shape index: {}]
  %s1 = inlined_call_operand.vmem [shape: f32[8,32], index: 1, kind: input, shape index: {}]
  %s2 = inlined_call_operand.vmem [shape: f32[8,1], index: 2, kind: input, shape index: {}]
  %s3 = inlined_call_operand.vmem [shape: f32[2,8,16], index: 3, kind: output, shape index: {}]
  %s4 = sld [smem:[#allocation0]]
  $region49: #{decoder_linear_forward.1} parent=0
    _
  %s6 = ssub.s32 1, %s4
  %s7 = scalar_select 0, %s6, %s4
  $region1: #{decoder_linear_forward.1} parent=0
    #allocation2 [shape = 'u8[16384]{0}', space=vmem, size = 0x4000, scoped, tag = 'input window, operand 0']
    #allocation3 [shape = 's32[2]{0}', space=sflag, size = 0x8, scoped, tag = 'scoped memory for decoder_linear_forward.1']
    %8 = vsyncpa [#allocation3], 0
    %s9 = scalar_lea.sflag [#allocation3], 1
    %10 = vsyncpa %s9, 0
    loop: start=0, step=1, limit=4
    $region2: #{decoder_linear_forward.1} parent=1 // loop_pre_header
      _
    $region3: #{decoder_linear_forward.1} parent=1 // loop_header
      %s12 = sphi 0, %s16
      %p13 = scmp.ge.s32.totalorder %s12, 4
      %s19 = sphi 0, %s31
      %s20 = sphi 0, %s27
      %s21 = sphi 0, %s19
      %s22 = sphi 0, %s20
      %s23 = sphi 0, %s21
      %s24 = sphi 0, %s22
      %s36 = sphi 0, %s38
      %s39 = sphi 0, %s36
      %s40 = sphi 0, %s39
      %s56 = sphi 0, %s40
      %s60 = sphi 0, %s60
      %s62 = sphi 0, %s60
      %s63 = sphi 0, %s62
      %s77 = sphi 0, %s63
      %s81 = sphi 0, %s81
      %s83 = sphi 0, %s81
      %s84 = sphi 0, %s83
      %s98 = sphi 0, %s84
      %s106 = sphi 0, %s108
      %s109 = sphi 0, %s106
      %s110 = sphi 0, %s109
      %s126 = sphi 0, %s110
    $region4: #{decoder_linear_forward.1} parent=1 // loop_header_branch
      %15 = sbr.rel (%p13) target = $region8
    $region5: #{decoder_linear_forward.1} parent=1 // loop_body
      %s17 = ssub.s32 %s12, 1
      %s18 = ssub.s32 %s12, 2
      %s25 = sadd.s32 1, %s20
      %p26 = scmp.ge.s32.totalorder %s25, 1
      %s27 = scalar_select %p26, 0, %s25
      %s28 = sadd.s32 1, %s19
      %s29 = scalar_select %p26, %s28, %s19
      %p30 = scmp.ge.s32.totalorder %s29, 2
      %s31 = scalar_select %p30, 0, %s29
      %s32 = ssub.s32 %s19, %s31
      %s33 = ssub.s32 %s20, %s27
      %s34 = sor.u32 %s32, %s33
      %p35 = scmp.eq.s32.totalorder %s34, 0
      %s37 = sadd.s32 %s36, 1
      %s38 = scalar_select %p35, %s36, %s37
      %p41 = pneg %p35
      %p42 = scmp.eq.s32.totalorder %s12, 1
      %p43 = por %p41, %p42
      %p44 = scmp.ne.s32.totalorder %s36, %s39
      %p45 = scmp.eq.s32.totalorder %s12, 0
      %p46 = por %p44, %p45
      %p47 = scmp.ne.s32.totalorder %s36, %s39
      %p48 = scmp.eq.s32.totalorder %s17, 1
      %p49 = por %p47, %p48
      %p50 = scmp.ne.s32.totalorder %s39, %s40
      %p51 = scmp.eq.s32.totalorder %s17, 0
      %p52 = por %p50, %p51
      %p53 = scmp.ne.s32.totalorder %s39, %s40
      %p54 = scmp.eq.s32.totalorder %s18, 1
      %p55 = por %p53, %p54
      %p57 = scmp.ne.s32.totalorder %s40, %s56
      %p58 = scmp.eq.s32.totalorder %s18, 0
      %p59 = por %p57, %p58
      %s61 = sadd.s32 %s60, 1
      %p64 = scmp.eq.s32.totalorder %s12, 1
      %p65 = scmp.ne.s32.totalorder %s60, %s62
      %p66 = scmp.eq.s32.totalorder %s12, 0
      %p67 = por %p65, %p66
      %p68 = scmp.ne.s32.totalorder %s60, %s62
      %p69 = scmp.eq.s32.totalorder %s17, 1
      %p70 = por %p68, %p69
      %p71 = scmp.ne.s32.totalorder %s62, %s63
      %p72 = scmp.eq.s32.totalorder %s17, 0
      %p73 = por %p71, %p72
      %p74 = scmp.ne.s32.totalorder %s62, %s63
      %p75 = scmp.eq.s32.totalorder %s18, 1
      %p76 = por %p74, %p75
      %p78 = scmp.ne.s32.totalorder %s63, %s77
      %p79 = scmp.eq.s32.totalorder %s18, 0
      %p80 = por %p78, %p79
      %s82 = sadd.s32 %s81, 1
      %p85 = scmp.eq.s32.totalorder %s12, 1
      %p86 = scmp.ne.s32.totalorder %s81, %s83
      %p87 = scmp.eq.s32.totalorder %s12, 0
      %p88 = por %p86, %p87
      %p89 = scmp.ne.s32.totalorder %s81, %s83
      %p90 = scmp.eq.s32.totalorder %s17, 1
      %p91 = por %p89, %p90
      %p92 = scmp.ne.s32.totalorder %s83, %s84
      %p93 = scmp.eq.s32.totalorder %s17, 0
      %p94 = por %p92, %p93
      %p95 = scmp.ne.s32.totalorder %s83, %s84
      %p96 = scmp.eq.s32.totalorder %s18, 1
      %p97 = por %p95, %p96
      %p99 = scmp.ne.s32.totalorder %s84, %s98
      %p100 = scmp.eq.s32.totalorder %s18, 0
      %p101 = por %p99, %p100
      %s102 = ssub.s32 %s19, %s31
      %s103 = ssub.s32 %s20, %s27
      %s104 = sor.u32 %s102, %s103
      %p105 = scmp.eq.s32.totalorder %s104, 0
      %s107 = sadd.s32 %s106, 1
      %s108 = scalar_select %p105, %s106, %s107
      %p111 = pneg %p105
      %p112 = scmp.eq.s32.totalorder %s12, 1
      %p113 = por %p111, %p112
      %p114 = scmp.ne.s32.totalorder %s106, %s109
      %p115 = scmp.eq.s32.totalorder %s12, 0
      %p116 = por %p114, %p115
      %p117 = scmp.ne.s32.totalorder %s106, %s109
      %p118 = scmp.eq.s32.totalorder %s17, 1
      %p119 = por %p117, %p118
      %p120 = scmp.ne.s32.totalorder %s109, %s110
      %p121 = scmp.eq.s32.totalorder %s17, 0
      %p122 = por %p120, %p121
      %p123 = scmp.ne.s32.totalorder %s109, %s110
      %p124 = scmp.eq.s32.totalorder %s18, 1
      %p125 = por %p123, %p124
      %p127 = scmp.ne.s32.totalorder %s110, %s126
      %p128 = scmp.eq.s32.totalorder %s18, 0
      %p129 = por %p127, %p128
      %p130 = scmp.le.s32.totalorder 1, %s12
      %p131 = scmp.lt.s32.totalorder %s12, 3
      %p132 = pnand %p130, %p131
      %p133 = pneg %p132
      // Predicated region
      $region9: #{decoder_linear_forward.1} parent=5 // pred_check
        _
      $region10: #{decoder_linear_forward.1} parent=5 // pred_check_branch
        %135 = sbr.rel (%p132) target = $region12
      $region11: #{decoder_linear_forward.1} parent=5 // pred_region
        %s136 = ssub.s32 %s12, 1
        // Predicated region
        $region13: #{decoder_linear_forward.1} parent=11 // pred_check
          %p137 = pneg %p73
        $region14: #{decoder_linear_forward.1} parent=11 // pred_check_branch
          %139 = sbr.rel (%p137) target = $region16
        $region15: #{decoder_linear_forward.1} parent=11 // pred_region
          _
        $region16: #{decoder_linear_forward.1} parent=11 // pred_fallthru
          _
        // Predicated region
        $region17: #{decoder_linear_forward.1} parent=11 // pred_check
          %p140 = pneg %p94
        $region18: #{decoder_linear_forward.1} parent=11 // pred_check_branch
          %142 = sbr.rel (%p140) target = $region20
        $region19: #{decoder_linear_forward.1} parent=11 // pred_region
          _
        $region20: #{decoder_linear_forward.1} parent=11 // pred_fallthru
          _
      $region12: #{decoder_linear_forward.1} parent=5 // pred_fallthru
        _
      %p143 = scmp.lt.s32.totalorder %s12, 2
      // Predicated region
      $region21: #{decoder_linear_forward.1} parent=5 // pred_check
        %p144 = pneg %p143
      $region22: #{decoder_linear_forward.1} parent=5 // pred_check_branch
        %146 = sbr.rel (%p144) target = $region24
      $region23: #{decoder_linear_forward.1} parent=5 // pred_region
        // Predicated region
        $region25: #{decoder_linear_forward.1} parent=23 // pred_check
          %p147 = pneg %p46
        $region26: #{decoder_linear_forward.1} parent=23 // pred_check_branch
          %149 = sbr.rel (%p147) target = $region28
        $region27: #{decoder_linear_forward.1} parent=23 // pred_region
          %s150 = sand.u32 %s36, 1
          %s151 = scalar_lea.sflag [#allocation3], %s150
          %s152 = sand.u32 %s36, 1
          %s153 = smul.addr %s152, 16
          %s154 = scalar_lea.vmem [#allocation2], %s153
          %s155 = smul.u32 2, %s20
          %157 = vsyncadd %s151, 0
          %s158 = smul.addr %s19, 2
          %s159 = sadd.s32 %s155, %s158
          %s160 = smul.addr %s159, 8
          %s161 = scalar_lea.hbm %s0, %s160
          %s162 = sshll.u32 %s161, 4
          %s163 = int_to_ptr.hbm [resolvable:$true] %s162
          %s164 = sshll.u32 %s154, 4
          %s165 = int_to_ptr.vmem [resolvable:$true] %s164
          %170 = dma.hbm_to_vmem [thread:$0]  %s163, 256, %s165, %s151, 128, 128, 8
        $region28: #{decoder_linear_forward.1} parent=23 // pred_fallthru
          _
      $region24: #{decoder_linear_forward.1} parent=5 // pred_fallthru
        _
      %p171 = scmp.le.s32.totalorder 1, %s12
      %p172 = scmp.lt.s32.totalorder %s12, 3
      %p173 = pnand %p171, %p172
      %p174 = pneg %p173
      // Predicated region
      $region29: #{decoder_linear_forward.1} parent=5 // pred_check
        _
      $region30: #{decoder_linear_forward.1} parent=5 // pred_check_branch
        %176 = sbr.rel (%p173) target = $region32
      $region31: #{decoder_linear_forward.1} parent=5 // pred_region
        %s177 = ssub.s32 %s12, 1
        %s178 = sand.u32 %s39, 1
        %s179 = scalar_lea.sflag [#allocation3], %s178
        %s180 = sand.u32 %s39, 1
        %s181 = smul.addr %s180, 16
        %s182 = scalar_lea.vmem [#allocation2], %s181
        // Predicated region
        $region33: #{decoder_linear_forward.1} parent=31 // pred_check
          %p183 = pneg %p52
        $region34: #{decoder_linear_forward.1} parent=31 // pred_check_branch
          %185 = sbr.rel (%p183) target = $region36
        $region35: #{decoder_linear_forward.1} parent=31 // pred_region
          %187 = dma.done %s179, 256
        $region36: #{decoder_linear_forward.1} parent=31 // pred_fallthru
          _
        %s188 = sand.u32 %s39, 1
        %s189 = scalar_lea.sflag [#allocation3], %s188
        %s190 = sand.u32 %s39, 1
        %s191 = smul.addr %s190, 16
        %s192 = scalar_lea.vmem [#allocation2], %s191
        %p193 = pneg %p52
        %p194 = pneg %p49
        %p195 = pneg %p73
        %p196 = pneg %p70
        %p197 = pneg %p94
        %p198 = pneg %p91
        %p199 = pneg %p122
        %p200 = pneg %p119
        %p201 = scmp.lt.s32.totalorder %s21, 1
        %s202 = scalar_select %p201, %s21, 1
        %p203 = scmp.lt.s32.totalorder %s22, 0
        %s204 = scalar_select %p203, %s22, 0
        %s205 = sadd.s32 %s204, %s202
        %s206 = smul.addr %s205, 8
        %s207 = scalar_lea.vmem %s3, %s206
        %s208 = smul.u32 2, %s22
        %p209 = scmp.lt.s32.totalorder %s21, 1
        %s210 = scalar_select %p209, %s21, 1
        %p211 = scmp.lt.s32.totalorder %s22, 0
        %s212 = scalar_select %p211, %s22, 0
        %s213 = sadd.s32 %s212, %s210
        %s214 = smul.addr %s213, 8
        %s215 = scalar_lea.vmem %s3, %s214
        %v216 = vld [vmem:[%s1] sm:$0xff]
        %v217 = vld [vmem:[%s182] sm:$0xff]
        %v218 = vld [vmem:[%s182 + $0x8] sm:$0xff]
        %v219 = vld [vmem:[%s2] sm:$0xff]
        %221 = vset.pattern.permute.xlu0 0
        %222 = vperm.xlu0 %221, %v219
        %v223 = vpop.permute.xlu0 %222
        %vm225 = vcmask 261120
        %v227 = vsel %vm225, %v216, 0
        %v230 = vsel %vm225, %v217, 0
        %v233 = vsel %vm225, %v218, 0
        %235 = vmatpush.xpose.msra.mxu0 0.0
        %236 = vmatpush.xpose.msra.mxu0 0.0
        %237 = vmatpush.xpose.msra.mxu0 0.0
        %238 = vmatpush.xpose.msra.mxu0 0.0
        %239 = vmatpush.xpose.msra.mxu0 0.0
        %240 = vmatpush.xpose.msra.mxu0 0.0
        %241 = vmatpush.xpose.msra.mxu0 0.0
        %242 = vmatpush.xpose.msra.mxu0 0.0
        %243 = vmatpush.xpose.msra.mxu0 0.0
        %244 = vmatpush.xpose.msra.mxu0 0.0
        %245 = vmatpush.xpose.msra.mxu0 0.0
        %246 = vmatpush.xpose.msra.mxu0 0.0
        %247 = vmatpush.xpose.msra.mxu0 0.0
        %248 = vmatpush.xpose.msra.mxu0 0.0
        %249 = vmatpush.xpose.msra.mxu0 %v233
        %250 = vmatpush.xpose.msra.mxu0 %v230
        %251 = vmatmul.f32.gmra.mxu0 %v227
        %v252 = vpop.f32.mrf.mxu0
        %v253 = vadd.f32 %v223, %v252
        %254 = vdwg.mxu0
        %vm255 = vcmask 130048
        %256 = vst.msk [vmem:[%s215] sm:$0xff] %vm255, %v253
        %p257 = scmp.lt.s32.totalorder %s21, 1
        %s258 = scalar_select %p257, %s21, 1
        %p259 = scmp.lt.s32.totalorder %s22, 0
        %s260 = scalar_select %p259, %s22, 0
        %s261 = sadd.s32 %s260, %s258
        %s262 = smul.addr %s261, 8
        %s263 = scalar_lea.vmem %s3, %s262
        // Predicated region
        $region37: #{decoder_linear_forward.1} parent=31 // pred_check
          %p264 = pneg %p119
        $region38: #{decoder_linear_forward.1} parent=31 // pred_check_branch
          %266 = sbr.rel (%p264) target = $region40
        $region39: #{decoder_linear_forward.1} parent=31 // pred_region
          _
        $region40: #{decoder_linear_forward.1} parent=31 // pred_fallthru
          _
      $region32: #{decoder_linear_forward.1} parent=5 // pred_fallthru
        _
      %p267 = scmp.le.s32.totalorder 2, %s12
      // Predicated region
      $region41: #{decoder_linear_forward.1} parent=5 // pred_check
        %p268 = pneg %p267
      $region42: #{decoder_linear_forward.1} parent=5 // pred_check_branch
        %270 = sbr.rel (%p268) target = $region44
      $region43: #{decoder_linear_forward.1} parent=5 // pred_region
        %s271 = ssub.s32 %s12, 2
        // Predicated region
        $region45: #{decoder_linear_forward.1} parent=43 // pred_check
          %p272 = pneg %p125
        $region46: #{decoder_linear_forward.1} parent=43 // pred_check_branch
          %274 = sbr.rel (%p272) target = $region48
        $region47: #{decoder_linear_forward.1} parent=43 // pred_region
          %p275 = scmp.lt.s32.totalorder %s23, 1
          %s276 = scalar_select %p275, %s23, 1
          %p277 = scmp.lt.s32.totalorder %s24, 0
          %s278 = scalar_select %p277, %s24, 0
          %s279 = sadd.s32 %s278, %s276
          %s280 = smul.addr %s279, 8
          %s281 = scalar_lea.vmem %s3, %s280
        $region48: #{decoder_linear_forward.1} parent=43 // pred_fallthru
          _
      $region44: #{decoder_linear_forward.1} parent=5 // pred_fallthru
        _
    $region6: #{decoder_linear_forward.1} parent=1 // loop_footer
      %s16 = sadd.s32 1, %s12
    $region7: #{decoder_linear_forward.1} parent=1 // loop_footer_branch
      %11 = sbr.rel target = $region3
    $region8: #{decoder_linear_forward.1} parent=1 // loop_exit
      _
    %282 = vsyncpa [#allocation3], 1
    %s283 = scalar_lea.sflag [#allocation3], 1
    %284 = vsyncpa %s283, 1

</llo_original>
